<compile_context>
chip_gen: v5e
topology: v5e:2x2
jax: 0.10.0
libtpu: 0.0.40
codegen_flags: <defaults>
</compile_context>

<pallas_src>
import functools

import jax
import jax.numpy as jnp
import numpy as np
from jax.experimental import pallas as pl
from jax.experimental.pallas import tpu as pltpu


# ----------------------------- Pallas kernel ------------------------------ #
def _attention_gate_kernel(x_ref, g_ref, wx_ref, wg_ref, b_ref, wpsi_ref,
                           bpsi_ref, out_ref, *, g_preprojected):
    """One (B_tile, C, TM) block: channels in sublanes, pixels in lanes."""
    wx = wx_ref[...]                      # (F_int, F_l), io dtype (bf16-native MXU)
    b = b_ref[...]                        # (F_int, 1) f32 (fused bg+bx, or bx)
    wpsi = wpsi_ref[...]                  # (F_int, 1) f32
    bpsi = bpsi_ref[...]                  # (1, 1) f32
    if not g_preprojected:
        wg = wg_ref[...]                  # (F_int, F_g), io dtype

    bt = x_ref.shape[0]                   # static batch-tile size -> unrolled loop
    for bi in range(bt):
        x = x_ref[bi]                                             # (F_l, TM)
        x1 = jnp.dot(wx, x, preferred_element_type=jnp.float32)   # MXU, f32 acc
        if g_preprojected:
            g1 = g_ref[bi].astype(jnp.float32)                    # already Wg@g+bg
        else:
            g1 = jnp.dot(wg, g_ref[bi], preferred_element_type=jnp.float32)
        h = jnp.maximum(x1 + g1 + b, 0.0)                         # (F_int, TM) f32
        # 1-output-channel psi projection: VPU multiply + sublane reduce (XLU),
        # avoiding an M=1 MXU push/pop.
        psi = jnp.sum(h * wpsi, axis=0, keepdims=True) + bpsi     # (1, TM) f32
        psi = jax.nn.sigmoid(psi)
        out_ref[bi] = (x * psi).astype(out_ref.dtype)             # lane-dense store


# ------------------------------ helpers ------------------------------------ #
def fold_conv_bn(conv_w, conv_b, gamma, beta, mean, var, eps=1e-5):
    """Fold a 1x1 Conv2d (+bias) and eval-mode BatchNorm2d into (W, b)."""
    inv_std = gamma / jnp.sqrt(var + eps)                 # (C_out,)
    w_folded = conv_w * inv_std[:, None]                  # (C_out, C_in)
    b_folded = (conv_b - mean) * inv_std + beta           # (C_out,)
    return w_folded.astype(jnp.float32), b_folded.reshape(-1, 1).astype(jnp.float32)


def _vmem_capacity_bytes():
    try:
        return int(pltpu.get_tpu_info().vmem_capacity_bytes)
    except Exception:
        return 128 << 20                                  # v5e/v6e default


def _select_tiling(N, HW, F_l, Cg, F_int, itemsize):
    """Pick (batch_tile, pixel_tile, vmem_limit) from HBM/VMEM budgets."""
    vmem_cap = _vmem_capacity_bytes()
    # v7x (64 MiB VMEM/TC) has ~3.2 TB/s HBM: target bigger per-step bytes there.
    step_target = (10 << 20) if vmem_cap <= (96 << 20) else (3 << 20)

    bytes_per_px = (2 * F_l + Cg) * itemsize              # x read + out write + g read
    # double-buffered io tiles + f32 intermediates (x1/g1 accumulator, h, psi)
    vmem_per_px = 2 * bytes_per_px + (2 * F_int + 2) * 4
    weights_bytes = 2 * 4 * (F_int * (F_l + Cg + 2) + 2)  # double-buffered consts
    budget = max(4 << 20, int(0.45 * vmem_cap) - weights_bytes)

    max_px = int(max(128, min(step_target // bytes_per_px, budget // vmem_per_px)))
    if HW > max_px:
        b_tile = 1
        tile = max(128, (max_px // 128) * 128)            # multiple of 128 lanes
    else:
        tile = HW                                         # full spatial extent
        b_tile = int(max(1, min(N, max_px // max(HW, 1))))
        if b_tile >= N and N > 1:
            b_tile = (N + 1) // 2                         # keep >= 2 grid points
        elif N == 1 and HW >= 256:
            tile = ((HW // 2 + 127) // 128) * 128         # split HW for dual-TC v7x

    working_set = (2 * b_tile * tile * bytes_per_px
                   + tile * (2 * F_int + 2) * 4
                   + weights_bytes)
    vmem_limit = int(min(max(working_set + (8 << 20), 32 << 20),
                         int(0.85 * vmem_cap)))
    return b_tile, tile, vmem_limit


# ------------------------------ wrapper ------------------------------------ #
@jax.jit
def attention_block(x, g, params):
    """x: (N, F_l, H, W), g: (N, F_g, Hg, Wg)  ->  (N, F_l, H, W)."""
    N, F_l, H, W = x.shape
    wg, bg = params["wg"], params["bg"]          # (F_int, F_g), (F_int, 1)
    wx, bx = params["wx"], params["bx"]          # (F_int, F_l), (F_int, 1)
    wpsi, bpsi = params["wpsi"], params["bpsi"]  # (1, F_int),   (1, 1)
    F_int = wx.shape[0]
    io_dtype = x.dtype

    g_preprojected = g.shape[2:] != (H, W)
    if g_preprojected:
        # Same op order as PyTorch: project g at its coarse resolution, then
        # bilinearly upsample g1 (only F_int channels move at full resolution).
        # TODO(synk): fuse the bilinear lerp into the kernel to drop the extra
        # full-resolution HBM pass for g1 entirely.
        g1 = jnp.einsum("oc,nchw->nohw", wg, g.astype(jnp.float32)) \
             + bg.reshape(1, -1, 1, 1)
        g1 = jax.image.resize(g1, (N, F_int, H, W), method="linear")
        g_in = g1.astype(io_dtype)
        wg_k = jnp.zeros((1, 1), io_dtype)       # unused dummy (never read)
        b_sum = bx                               # bg already folded into g1
    else:
        g_in = g
        wg_k = wg.astype(io_dtype)               # bf16 weights -> native MXU path
        b_sum = bg + bx                          # single fused bias add

    wx_k = wx.astype(io_dtype)
    wpsi_col = wpsi.reshape(F_int, 1).astype(jnp.float32)
    bpsi2 = bpsi.reshape(1, 1).astype(jnp.float32)

    Cg = g_in.shape[1]
    HW = H * W
    x3 = x.reshape(N, F_l, HW)                   # free reshape (contiguous merge)
    g3 = g_in.reshape(N, Cg, HW)

    itemsize = jnp.dtype(io_dtype).itemsize
    b_tile, tile, vmem_limit = _select_tiling(N, HW, F_l, Cg, F_int, itemsize)
    grid = (pl.cdiv(N, b_tile), pl.cdiv(HW, tile))   # ragged tails: writes masked

    const2d = lambda shape: pl.BlockSpec(shape, lambda n, i: (0, 0))
    kernel = functools.partial(_attention_gate_kernel,
                               g_preprojected=g_preprojected)

    out3 = pl.pallas_call(
        kernel,
        out_shape=jax.ShapeDtypeStruct((N, F_l, HW), io_dtype),
        grid_spec=pltpu.PrefetchScalarGridSpec(
            num_scalar_prefetch=0,
            grid=grid,
            in_specs=[
                pl.BlockSpec((b_tile, F_l, tile), lambda n, i: (n, 0, i)),  # x
                pl.BlockSpec((b_tile, Cg, tile), lambda n, i: (n, 0, i)),   # g / g1
                const2d(wx_k.shape),      # wx
                const2d(wg_k.shape),      # wg (or dummy)
                const2d((F_int, 1)),      # fused bias
                const2d((F_int, 1)),      # wpsi column
                const2d((1, 1)),          # bpsi
            ],
            out_specs=pl.BlockSpec((b_tile, F_l, tile), lambda n, i: (n, 0, i)),
        ),
        compiler_params=pltpu.CompilerParams(
            dimension_semantics=("parallel", "parallel"),
            vmem_limit_bytes=vmem_limit),
    )(x3, g3, wx_k, wg_k, b_sum, wpsi_col, bpsi2)

    return out3.reshape(N, F_l, H, W)


# ------------------------- reference (pure JAX) ---------------------------- #
def attention_block_ref(x, g, params):
    g1 = jnp.einsum("oc,nchw->nohw", params["wg"], g) + params["bg"].reshape(1, -1, 1, 1)
    x1 = jnp.einsum("oc,nchw->nohw", params["wx"], x) + params["bx"].reshape(1, -1, 1, 1)
    if g1.shape[2:] != x1.shape[2:]:
        # half-pixel sampling ~ torch F.interpolate(mode='bilinear', align_corners=False)
        g1 = jax.image.resize(g1, g1.shape[:2] + x1.shape[2:], method="linear")
    h = jnp.maximum(g1 + x1, 0.0)
    psi = jax.nn.sigmoid(
        jnp.einsum("oc,nchw->nohw", params["wpsi"], h) + params["bpsi"].reshape(1, -1, 1, 1))
    return x * psi


# --------------------------------- main ------------------------------------ #
if __name__ == "__main__":
    # AttentionBlock(F_g, F_l, F_int)
    F_g, F_l, F_int = 4, 4, 8
    N, H, W = 2, 16, 16

    key = jax.random.PRNGKey(0)
    keys = jax.random.split(key, 16)

    # Deterministic synthetic parameters (conv weights/biases + BN stats/affine).
    conv_wg = jax.random.normal(keys[0], (F_int, F_g), jnp.float32) * 0.2
    conv_bg = jax.random.normal(keys[1], (F_int,), jnp.float32) * 0.1
    conv_wx = jax.random.normal(keys[2], (F_int, F_l), jnp.float32) * 0.2
    conv_bx = jax.random.normal(keys[3], (F_int,), jnp.float32) * 0.1
    conv_wp = jax.random.normal(keys[4], (1, F_int), jnp.float32) * 0.2
    conv_bp = jax.random.normal(keys[5], (1,), jnp.float32) * 0.1

    def bn_params(k, c):
        k1, k2, k3, k4 = jax.random.split(k, 4)
        gamma = 1.0 + 0.1 * jax.random.normal(k1, (c,), jnp.float32)
        beta = 0.1 * jax.random.normal(k2, (c,), jnp.float32)
        mean = 0.1 * jax.random.normal(k3, (c,), jnp.float32)
        var = jnp.abs(1.0 + 0.1 * jax.random.normal(k4, (c,), jnp.float32))
        return gamma, beta, mean, var

    bn_g = bn_params(keys[6], F_int)
    bn_x = bn_params(keys[7], F_int)
    bn_p = bn_params(keys[8], 1)

    wg, bg = fold_conv_bn(conv_wg, conv_bg, *bn_g)
    wx, bx = fold_conv_bn(conv_wx, conv_bx, *bn_x)
    wpsi, bpsi = fold_conv_bn(conv_wp, conv_bp, *bn_p)
    params = dict(wg=wg, bg=bg, wx=wx, bx=bx, wpsi=wpsi, bpsi=bpsi)

    # Inputs (NCHW, like PyTorch)
    x = jax.random.normal(keys[9], (N, F_l, H, W), jnp.float32)
    g = jax.random.normal(keys[10], (N, F_g, H, W), jnp.float32)

    # f32 path, same resolution.
    out = jax.block_until_ready(attention_block(x, g, params))
    ref = attention_block_ref(x, g, params)
    np.testing.assert_allclose(np.asarray(out), np.asarray(ref), rtol=1e-4, atol=1e-5)

    # bf16-at-HBM path (halves bytes moved on this memory-bound op; bf16 into MXU).
    out_bf16 = jax.block_until_ready(
        attention_block(x.astype(jnp.bfloat16), g.astype(jnp.bfloat16), params))
    np.testing.assert_allclose(np.asarray(out_bf16, dtype=np.float32), np.asarray(ref),
                               rtol=5e-2, atol=5e-2)

    # Coarse-g path: project g at low resolution, upsample g1 (PyTorch op order).
    g_small = jax.random.normal(keys[11], (N, F_g, H // 2, W // 2), jnp.float32)
    out_up = jax.block_until_ready(attention_block(x, g_small, params))
    ref_up = attention_block_ref(x, g_small, params)
    np.testing.assert_allclose(np.asarray(out_up), np.asarray(ref_up),
                               rtol=1e-4, atol=1e-5)

    print("KERNEL_OK")
</pallas_src>

<mosaic_0001>
module attributes {stable_mosaic.version = 11 : i64} {
  func.func @_attention_gate_kernel(%arg0: i32, %arg1: i32, %arg2: memref<1x4x256xf32, #tpu.memory_space<vmem>>, %arg3: memref<1x4x256xf32, #tpu.memory_space<vmem>>, %arg4: memref<8x4xf32, #tpu.memory_space<vmem>>, %arg5: memref<8x4xf32, #tpu.memory_space<vmem>>, %arg6: memref<8x1xf32, #tpu.memory_space<vmem>>, %arg7: memref<8x1xf32, #tpu.memory_space<vmem>>, %arg8: memref<1x1xf32, #tpu.memory_space<vmem>>, %arg9: memref<1x4x256xf32, #tpu.memory_space<vmem>>) attributes {dimension_semantics = [#tpu.dimension_semantics<parallel>, #tpu.dimension_semantics<parallel>], iteration_bounds = array<i64: 2, 1>, scalar_prefetch = 0 : i64, scratch_operands = 0 : i64, tpu.core_type = #tpu.core_type<tc>, window_params = [{transform_indices = @transform_0, window_bounds = array<i64: 1, 4, 256>}, {transform_indices = @transform_1, window_bounds = array<i64: 1, 4, 256>}, {pipeline_mode = #tpu.pipeline_mode<synchronous>, transform_indices = @transform_2, window_bounds = array<i64: 8, 4>}, {pipeline_mode = #tpu.pipeline_mode<synchronous>, transform_indices = @transform_3, window_bounds = array<i64: 8, 4>}, {pipeline_mode = #tpu.pipeline_mode<synchronous>, transform_indices = @transform_4, window_bounds = array<i64: 8, 1>}, {pipeline_mode = #tpu.pipeline_mode<synchronous>, transform_indices = @transform_5, window_bounds = array<i64: 8, 1>}, {pipeline_mode = #tpu.pipeline_mode<synchronous>, transform_indices = @transform_6, window_bounds = array<i64: 1, 1>}, {transform_indices = @transform_7, window_bounds = array<i64: 1, 4, 256>}]} {
    %c0 = arith.constant 0 : index
    %c0_0 = arith.constant 0 : index
    %0 = vector.load %arg4[%c0, %c0_0] : memref<8x4xf32, #tpu.memory_space<vmem>>, vector<8x4xf32>
    %c0_1 = arith.constant 0 : index
    %c0_2 = arith.constant 0 : index
    %1 = vector.load %arg6[%c0_1, %c0_2] : memref<8x1xf32, #tpu.memory_space<vmem>>, vector<8x1xf32>
    %c0_3 = arith.constant 0 : index
    %c0_4 = arith.constant 0 : index
    %2 = vector.load %arg7[%c0_3, %c0_4] : memref<8x1xf32, #tpu.memory_space<vmem>>, vector<8x1xf32>
    %c0_5 = arith.constant 0 : index
    %c0_6 = arith.constant 0 : index
    %3 = vector.load %arg8[%c0_5, %c0_6] : memref<1x1xf32, #tpu.memory_space<vmem>>, vector<1x1xf32>
    %c0_7 = arith.constant 0 : index
    %c0_8 = arith.constant 0 : index
    %4 = vector.load %arg5[%c0_7, %c0_8] : memref<8x4xf32, #tpu.memory_space<vmem>>, vector<8x4xf32>
    %c0_9 = arith.constant 0 : index
    %c0_10 = arith.constant 0 : index
    %c0_11 = arith.constant 0 : index
    %5 = vector.load %arg2[%c0_9, %c0_10, %c0_11] : memref<1x4x256xf32, #tpu.memory_space<vmem>>, vector<1x4x256xf32>
    %6 = vector.shape_cast %5 : vector<1x4x256xf32> to vector<4x256xf32>
    %cst = arith.constant dense<0.000000e+00> : vector<8x256xf32>
    %7 = tpu.matmul %0, %6, %cst {dimension_numbers = #tpu.dot_dimension_numbers<[1], [0], [0], [1], [0, 0, 1, 1], [], []>} : vector<8x4xf32>, vector<4x256xf32>, vector<8x256xf32> -> vector<8x256xf32>
    %c0_12 = arith.constant 0 : index
    %c0_13 = arith.constant 0 : index
    %c0_14 = arith.constant 0 : index
    %8 = vector.load %arg3[%c0_12, %c0_13, %c0_14] : memref<1x4x256xf32, #tpu.memory_space<vmem>>, vector<1x4x256xf32>
    %9 = vector.shape_cast %8 : vector<1x4x256xf32> to vector<4x256xf32>
    %cst_15 = arith.constant dense<0.000000e+00> : vector<8x256xf32>
    %10 = tpu.matmul %4, %9, %cst_15 {dimension_numbers = #tpu.dot_dimension_numbers<[1], [0], [0], [1], [0, 0, 1, 1], [], []>} : vector<8x4xf32>, vector<4x256xf32>, vector<8x256xf32> -> vector<8x256xf32>
    %11 = arith.addf %7, %10 : vector<8x256xf32>
    %12 = vector.broadcast %1 : vector<8x1xf32> to vector<8x256xf32>
    %13 = arith.addf %11, %12 : vector<8x256xf32>
    %cst_16 = arith.constant 0.000000e+00 : f32
    %14 = vector.broadcast %cst_16 : f32 to vector<8x256xf32>
    %15 = arith.maximumf %13, %14 : vector<8x256xf32>
    %16 = vector.broadcast %2 : vector<8x1xf32> to vector<8x256xf32>
    %17 = arith.mulf %15, %16 : vector<8x256xf32>
    %cst_17 = arith.constant dense<0.000000e+00> : vector<256xf32>
    %18 = vector.multi_reduction <add>, %17, %cst_17 [0] : vector<8x256xf32> to vector<256xf32>
    %19 = vector.shape_cast %18 : vector<256xf32> to vector<1x256xf32>
    %20 = vector.broadcast %3 : vector<1x1xf32> to vector<1x256xf32>
    %21 = arith.addf %19, %20 : vector<1x256xf32>
    %22 = arith.negf %21 : vector<1x256xf32>
    %23 = math.exp %22 : vector<1x256xf32>
    %cst_18 = arith.constant 1.000000e+00 : f32
    %24 = vector.broadcast %cst_18 : f32 to vector<1x256xf32>
    %25 = arith.addf %24, %23 : vector<1x256xf32>
    %26 = arith.divf %24, %25 : vector<1x256xf32>
    %27 = vector.broadcast %26 : vector<1x256xf32> to vector<4x256xf32>
    %28 = arith.mulf %6, %27 : vector<4x256xf32>
    %c0_19 = arith.constant 0 : index
    %c0_20 = arith.constant 0 : index
    %c0_21 = arith.constant 0 : index
    %29 = vector.load %arg9[%c0_19, %c0_20, %c0_21] : memref<1x4x256xf32, #tpu.memory_space<vmem>>, vector<1x4x256xf32>
    %30 = vector.shape_cast %29 : vector<1x4x256xf32> to vector<4x256xf32>
    %31 = vector.shape_cast %28 : vector<4x256xf32> to vector<1x4x256xf32>
    tpu.vector_store %arg9[%c0_19, %c0_20, %c0_21], %31 {strides = array<i32>} : memref<1x4x256xf32, #tpu.memory_space<vmem>>, vector<1x4x256xf32>,
    return
  }
  func.func @transform_0(%arg0: i32, %arg1: i32) -> (i32, i32, i32) {
    %c0_i32 = arith.constant 0 : i32
    %c0_i32_0 = arith.constant 0 : i32
    return %arg0, %c0_i32, %arg1 : i32, i32, i32
  }
  func.func @transform_1(%arg0: i32, %arg1: i32) -> (i32, i32, i32) {
    %c0_i32 = arith.constant 0 : i32
    %c0_i32_0 = arith.constant 0 : i32
    return %arg0, %c0_i32, %arg1 : i32, i32, i32
  }
  func.func @transform_2(%arg0: i32, %arg1: i32) -> (i32, i32) {
    %c0_i32 = arith.constant 0 : i32
    %c0_i32_0 = arith.constant 0 : i32
    %c0_i32_1 = arith.constant 0 : i32
    return %c0_i32, %c0_i32_0 : i32, i32
  }
  func.func @transform_3(%arg0: i32, %arg1: i32) -> (i32, i32) {
    %c0_i32 = arith.constant 0 : i32
    %c0_i32_0 = arith.constant 0 : i32
    %c0_i32_1 = arith.constant 0 : i32
    return %c0_i32, %c0_i32_0 : i32, i32
  }
  func.func @transform_4(%arg0: i32, %arg1: i32) -> (i32, i32) {
    %c0_i32 = arith.constant 0 : i32
    %c0_i32_0 = arith.constant 0 : i32
    %c0_i32_1 = arith.constant 0 : i32
    return %c0_i32, %c0_i32_0 : i32, i32
  }
  func.func @transform_5(%arg0: i32, %arg1: i32) -> (i32, i32) {
    %c0_i32 = arith.constant 0 : i32
    %c0_i32_0 = arith.constant 0 : i32
    %c0_i32_1 = arith.constant 0 : i32
    return %c0_i32, %c0_i32_0 : i32, i32
  }
  func.func @transform_6(%arg0: i32, %arg1: i32) -> (i32, i32) {
    %c0_i32 = arith.constant 0 : i32
    %c0_i32_0 = arith.constant 0 : i32
    %c0_i32_1 = arith.constant 0 : i32
    return %c0_i32, %c0_i32_0 : i32, i32
  }
  func.func @transform_7(%arg0: i32, %arg1: i32) -> (i32, i32, i32) {
    %c0_i32 = arith.constant 0 : i32
    %c0_i32_0 = arith.constant 0 : i32
    return %arg0, %c0_i32, %arg1 : i32, i32, i32
  }
}

</mosaic_0001>

<llo_original>
// kernel: attention_block.1
$region0: #{attention_block.1}
  #allocation0 [shape = 'u32[]', space=smem, size = 0x4, offset = 0x4, fixed_abs, tag = 'smem constant byte address 0x4 - core index']
  #allocation1 [shape = 'u32[72,128]{1,0:T(1,128)}', space=vmem, size = 0x9000, scoped, tag = 'internal scratch']
  #allocation2 [shape = 'f32[1,1]{1,0:T(1,128)S(1)}', space=vmem, size = 0x200, scoped, tag = 'scoped memory for attention_block.1']
  %s0 = inlined_call_operand.vmem [shape: f32[2,4,256], index: 0, kind: input, shape index: {}]
  %s1 = inlined_call_operand.vmem [shape: f32[2,4,256], index: 1, kind: input, shape index: {}]
  %s2 = inlined_call_operand.vmem [shape: f32[8,4], index: 2, kind: input, shape index: {}]
  %s3 = inlined_call_operand.vmem [shape: f32[8,4], index: 3, kind: input, shape index: {}]
  %s4 = inlined_call_operand.vmem [shape: f32[8,1], index: 4, kind: input, shape index: {}]
  %s5 = inlined_call_operand.vmem [shape: f32[8,1], index: 5, kind: input, shape index: {}]
  %s6 = inlined_call_operand.<no memory space> [shape: f32[1,1], index: 6, kind: input, shape index: {}]
  %s7 = inlined_call_operand.vmem [shape: f32[2,4,256], index: 7, kind: output, shape index: {}]
  %s8 = sld [smem:[#allocation0]]
  $region61: #{attention_block.1} parent=0
    _
  %s10 = ssub.s32 1, %s8
  %s11 = scalar_select 0, %s10, %s8
  %v12 = vstv %s6
  %13 = vst [vmem:[#allocation2] sm:$0x1] %v12
  loop: start=0, step=1, limit=4
  $region2: #{attention_block.1} parent=0 // loop_pre_header
    _
  $region3: #{attention_block.1} parent=0 // loop_header
    %s15 = sphi 0, %s19
    %p16 = scmp.ge.s32.totalorder %s15, 4
    %s22 = sphi 0, %s34
    %s23 = sphi 0, %s30
    %s24 = sphi 0, %s22
    %s25 = sphi 0, %s23
    %s26 = sphi 0, %s24
    %s27 = sphi 0, %s25
    %s39 = sphi 0, %s41
    %s42 = sphi 0, %s39
    %s43 = sphi 0, %s42
    %s59 = sphi 0, %s43
    %s67 = sphi 0, %s69
    %s70 = sphi 0, %s67
    %s71 = sphi 0, %s70
    %s87 = sphi 0, %s71
    %s91 = sphi 0, %s91
    %s93 = sphi 0, %s91
    %s94 = sphi 0, %s93
    %s108 = sphi 0, %s94
    %s112 = sphi 0, %s112
    %s114 = sphi 0, %s112
    %s115 = sphi 0, %s114
    %s129 = sphi 0, %s115
    %s133 = sphi 0, %s133
    %s135 = sphi 0, %s133
    %s136 = sphi 0, %s135
    %s150 = sphi 0, %s136
    %s154 = sphi 0, %s154
    %s156 = sphi 0, %s154
    %s157 = sphi 0, %s156
    %s171 = sphi 0, %s157
    %s175 = sphi 0, %s175
    %s177 = sphi 0, %s175
    %s178 = sphi 0, %s177
    %s192 = sphi 0, %s178
    %s200 = sphi 0, %s202
    %s203 = sphi 0, %s200
    %s204 = sphi 0, %s203
    %s220 = sphi 0, %s204
  $region4: #{attention_block.1} parent=0 // loop_header_branch
    %18 = sbr.rel (%p16) target = $region8
  $region5: #{attention_block.1} parent=0 // loop_body
    %s20 = ssub.s32 %s15, 1
    %s21 = ssub.s32 %s15, 2
    %s28 = sadd.s32 1, %s23
    %p29 = scmp.ge.s32.totalorder %s28, 1
    %s30 = scalar_select %p29, 0, %s28
    %s31 = sadd.s32 1, %s22
    %s32 = scalar_select %p29, %s31, %s22
    %p33 = scmp.ge.s32.totalorder %s32, 2
    %s34 = scalar_select %p33, 0, %s32
    %s35 = ssub.s32 %s22, %s34
    %s36 = ssub.s32 %s23, %s30
    %s37 = sor.u32 %s35, %s36
    %p38 = scmp.eq.s32.totalorder %s37, 0
    %s40 = sadd.s32 %s39, 1
    %s41 = scalar_select %p38, %s39, %s40
    %p44 = pneg %p38
    %p45 = scmp.eq.s32.totalorder %s15, 1
    %p46 = por %p44, %p45
    %p47 = scmp.ne.s32.totalorder %s39, %s42
    %p48 = scmp.eq.s32.totalorder %s15, 0
    %p49 = por %p47, %p48
    %p50 = scmp.ne.s32.totalorder %s39, %s42
    %p51 = scmp.eq.s32.totalorder %s20, 1
    %p52 = por %p50, %p51
    %p53 = scmp.ne.s32.totalorder %s42, %s43
    %p54 = scmp.eq.s32.totalorder %s20, 0
    %p55 = por %p53, %p54
    %p56 = scmp.ne.s32.totalorder %s42, %s43
    %p57 = scmp.eq.s32.totalorder %s21, 1
    %p58 = por %p56, %p57
    %p60 = scmp.ne.s32.totalorder %s43, %s59
    %p61 = scmp.eq.s32.totalorder %s21, 0
    %p62 = por %p60, %p61
    %s63 = ssub.s32 %s22, %s34
    %s64 = ssub.s32 %s23, %s30
    %s65 = sor.u32 %s63, %s64
    %p66 = scmp.eq.s32.totalorder %s65, 0
    %s68 = sadd.s32 %s67, 1
    %s69 = scalar_select %p66, %s67, %s68
    %p72 = pneg %p66
    %p73 = scmp.eq.s32.totalorder %s15, 1
    %p74 = por %p72, %p73
    %p75 = scmp.ne.s32.totalorder %s67, %s70
    %p76 = scmp.eq.s32.totalorder %s15, 0
    %p77 = por %p75, %p76
    %p78 = scmp.ne.s32.totalorder %s67, %s70
    %p79 = scmp.eq.s32.totalorder %s20, 1
    %p80 = por %p78, %p79
    %p81 = scmp.ne.s32.totalorder %s70, %s71
    %p82 = scmp.eq.s32.totalorder %s20, 0
    %p83 = por %p81, %p82
    %p84 = scmp.ne.s32.totalorder %s70, %s71
    %p85 = scmp.eq.s32.totalorder %s21, 1
    %p86 = por %p84, %p85
    %p88 = scmp.ne.s32.totalorder %s71, %s87
    %p89 = scmp.eq.s32.totalorder %s21, 0
    %p90 = por %p88, %p89
    %s92 = sadd.s32 %s91, 1
    %p95 = scmp.eq.s32.totalorder %s15, 1
    %p96 = scmp.ne.s32.totalorder %s91, %s93
    %p97 = scmp.eq.s32.totalorder %s15, 0
    %p98 = por %p96, %p97
    %p99 = scmp.ne.s32.totalorder %s91, %s93
    %p100 = scmp.eq.s32.totalorder %s20, 1
    %p101 = por %p99, %p100
    %p102 = scmp.ne.s32.totalorder %s93, %s94
    %p103 = scmp.eq.s32.totalorder %s20, 0
    %p104 = por %p102, %p103
    %p105 = scmp.ne.s32.totalorder %s93, %s94
    %p106 = scmp.eq.s32.totalorder %s21, 1
    %p107 = por %p105, %p106
    %p109 = scmp.ne.s32.totalorder %s94, %s108
    %p110 = scmp.eq.s32.totalorder %s21, 0
    %p111 = por %p109, %p110
    %s113 = sadd.s32 %s112, 1
    %p116 = scmp.eq.s32.totalorder %s15, 1
    %p117 = scmp.ne.s32.totalorder %s112, %s114
    %p118 = scmp.eq.s32.totalorder %s15, 0
    %p119 = por %p117, %p118
    %p120 = scmp.ne.s32.totalorder %s112, %s114
    %p121 = scmp.eq.s32.totalorder %s20, 1
    %p122 = por %p120, %p121
    %p123 = scmp.ne.s32.totalorder %s114, %s115
    %p124 = scmp.eq.s32.totalorder %s20, 0
    %p125 = por %p123, %p124
    %p126 = scmp.ne.s32.totalorder %s114, %s115
    %p127 = scmp.eq.s32.totalorder %s21, 1
    %p128 = por %p126, %p127
    %p130 = scmp.ne.s32.totalorder %s115, %s129
    %p131 = scmp.eq.s32.totalorder %s21, 0
    %p132 = por %p130, %p131
    %s134 = sadd.s32 %s133, 1
    %p137 = scmp.eq.s32.totalorder %s15, 1
    %p138 = scmp.ne.s32.totalorder %s133, %s135
    %p139 = scmp.eq.s32.totalorder %s15, 0
    %p140 = por %p138, %p139
    %p141 = scmp.ne.s32.totalorder %s133, %s135
    %p142 = scmp.eq.s32.totalorder %s20, 1
    %p143 = por %p141, %p142
    %p144 = scmp.ne.s32.totalorder %s135, %s136
    %p145 = scmp.eq.s32.totalorder %s20, 0
    %p146 = por %p144, %p145
    %p147 = scmp.ne.s32.totalorder %s135, %s136
    %p148 = scmp.eq.s32.totalorder %s21, 1
    %p149 = por %p147, %p148
    %p151 = scmp.ne.s32.totalorder %s136, %s150
    %p152 = scmp.eq.s32.totalorder %s21, 0
    %p153 = por %p151, %p152
    %s155 = sadd.s32 %s154, 1
    %p158 = scmp.eq.s32.totalorder %s15, 1
    %p159 = scmp.ne.s32.totalorder %s154, %s156
    %p160 = scmp.eq.s32.totalorder %s15, 0
    %p161 = por %p159, %p160
    %p162 = scmp.ne.s32.totalorder %s154, %s156
    %p163 = scmp.eq.s32.totalorder %s20, 1
    %p164 = por %p162, %p163
    %p165 = scmp.ne.s32.totalorder %s156, %s157
    %p166 = scmp.eq.s32.totalorder %s20, 0
    %p167 = por %p165, %p166
    %p168 = scmp.ne.s32.totalorder %s156, %s157
    %p169 = scmp.eq.s32.totalorder %s21, 1
    %p170 = por %p168, %p169
    %p172 = scmp.ne.s32.totalorder %s157, %s171
    %p173 = scmp.eq.s32.totalorder %s21, 0
    %p174 = por %p172, %p173
    %s176 = sadd.s32 %s175, 1
    %p179 = scmp.eq.s32.totalorder %s15, 1
    %p180 = scmp.ne.s32.totalorder %s175, %s177
    %p181 = scmp.eq.s32.totalorder %s15, 0
    %p182 = por %p180, %p181
    %p183 = scmp.ne.s32.totalorder %s175, %s177
    %p184 = scmp.eq.s32.totalorder %s20, 1
    %p185 = por %p183, %p184
    %p186 = scmp.ne.s32.totalorder %s177, %s178
    %p187 = scmp.eq.s32.totalorder %s20, 0
    %p188 = por %p186, %p187
    %p189 = scmp.ne.s32.totalorder %s177, %s178
    %p190 = scmp.eq.s32.totalorder %s21, 1
    %p191 = por %p189, %p190
    %p193 = scmp.ne.s32.totalorder %s178, %s192
    %p194 = scmp.eq.s32.totalorder %s21, 0
    %p195 = por %p193, %p194
    %s196 = ssub.s32 %s22, %s34
    %s197 = ssub.s32 %s23, %s30
    %s198 = sor.u32 %s196, %s197
    %p199 = scmp.eq.s32.totalorder %s198, 0
    %s201 = sadd.s32 %s200, 1
    %s202 = scalar_select %p199, %s200, %s201
    %p205 = pneg %p199
    %p206 = scmp.eq.s32.totalorder %s15, 1
    %p207 = por %p205, %p206
    %p208 = scmp.ne.s32.totalorder %s200, %s203
    %p209 = scmp.eq.s32.totalorder %s15, 0
    %p210 = por %p208, %p209
    %p211 = scmp.ne.s32.totalorder %s200, %s203
    %p212 = scmp.eq.s32.totalorder %s20, 1
    %p213 = por %p211, %p212
    %p214 = scmp.ne.s32.totalorder %s203, %s204
    %p215 = scmp.eq.s32.totalorder %s20, 0
    %p216 = por %p214, %p215
    %p217 = scmp.ne.s32.totalorder %s203, %s204
    %p218 = scmp.eq.s32.totalorder %s21, 1
    %p219 = por %p217, %p218
    %p221 = scmp.ne.s32.totalorder %s204, %s220
    %p222 = scmp.eq.s32.totalorder %s21, 0
    %p223 = por %p221, %p222
    %p224 = scmp.le.s32.totalorder 1, %s15
    %p225 = scmp.lt.s32.totalorder %s15, 3
    %p226 = pnand %p224, %p225
    %p227 = pneg %p226
    // Predicated region
    $region9: #{attention_block.1} parent=5 // pred_check
      _
    $region10: #{attention_block.1} parent=5 // pred_check_branch
      %229 = sbr.rel (%p226) target = $region12
    $region11: #{attention_block.1} parent=5 // pred_region
      %s230 = ssub.s32 %s15, 1
      // Predicated region
      $region13: #{attention_block.1} parent=11 // pred_check
        %p231 = pneg %p104
      $region14: #{attention_block.1} parent=11 // pred_check_branch
        %233 = sbr.rel (%p231) target = $region16
      $region15: #{attention_block.1} parent=11 // pred_region
        _
      $region16: #{attention_block.1} parent=11 // pred_fallthru
        _
      // Predicated region
      $region17: #{attention_block.1} parent=11 // pred_check
        %p234 = pneg %p125
      $region18: #{attention_block.1} parent=11 // pred_check_branch
        %236 = sbr.rel (%p234) target = $region20
      $region19: #{attention_block.1} parent=11 // pred_region
        _
      $region20: #{attention_block.1} parent=11 // pred_fallthru
        _
      // Predicated region
      $region21: #{attention_block.1} parent=11 // pred_check
        %p237 = pneg %p146
      $region22: #{attention_block.1} parent=11 // pred_check_branch
        %239 = sbr.rel (%p237) target = $region24
      $region23: #{attention_block.1} parent=11 // pred_region
        _
      $region24: #{attention_block.1} parent=11 // pred_fallthru
        _
      // Predicated region
      $region25: #{attention_block.1} parent=11 // pred_check
        %p240 = pneg %p167
      $region26: #{attention_block.1} parent=11 // pred_check_branch
        %242 = sbr.rel (%p240) target = $region28
      $region27: #{attention_block.1} parent=11 // pred_region
        _
      $region28: #{attention_block.1} parent=11 // pred_fallthru
        _
      // Predicated region
      $region29: #{attention_block.1} parent=11 // pred_check
        %p243 = pneg %p188
      $region30: #{attention_block.1} parent=11 // pred_check_branch
        %245 = sbr.rel (%p243) target = $region32
      $region31: #{attention_block.1} parent=11 // pred_region
        _
      $region32: #{attention_block.1} parent=11 // pred_fallthru
        _
    $region12: #{attention_block.1} parent=5 // pred_fallthru
      _
    %p246 = scmp.lt.s32.totalorder %s15, 2
    // Predicated region
    $region33: #{attention_block.1} parent=5 // pred_check
      %p247 = pneg %p246
    $region34: #{attention_block.1} parent=5 // pred_check_branch
      %249 = sbr.rel (%p247) target = $region36
    $region35: #{attention_block.1} parent=5 // pred_region
      // Predicated region
      $region37: #{attention_block.1} parent=35 // pred_check
        %p250 = pneg %p49
      $region38: #{attention_block.1} parent=35 // pred_check_branch
        %252 = sbr.rel (%p250) target = $region40
      $region39: #{attention_block.1} parent=35 // pred_region
        %s253 = smul.u32 2, %s23
        %p254 = scmp.lt.s32.totalorder %s22, 1
        %s255 = scalar_select %p254, %s22, 1
        %p256 = scmp.lt.s32.totalorder %s253, 1
        %s257 = scalar_select %p256, %s253, 1
        %s258 = smul.addr %s255, 2
        %s259 = sadd.s32 %s257, %s258
        %s260 = smul.addr %s259, 4
        %s261 = scalar_lea.vmem %s0, %s260
        %s262 = smul.u32 2, %s23
      $region40: #{attention_block.1} parent=35 // pred_fallthru
        _
      // Predicated region
      $region41: #{attention_block.1} parent=35 // pred_check
        %p263 = pneg %p77
      $region42: #{attention_block.1} parent=35 // pred_check_branch
        %265 = sbr.rel (%p263) target = $region44
      $region43: #{attention_block.1} parent=35 // pred_region
        %s266 = smul.u32 2, %s23
        %p267 = scmp.lt.s32.totalorder %s22, 1
        %s268 = scalar_select %p267, %s22, 1
        %p269 = scmp.lt.s32.totalorder %s266, 1
        %s270 = scalar_select %p269, %s266, 1
        %s271 = smul.addr %s268, 2
        %s272 = sadd.s32 %s270, %s271
        %s273 = smul.addr %s272, 4
        %s274 = scalar_lea.vmem %s1, %s273
        %s275 = smul.u32 2, %s23
      $region44: #{attention_block.1} parent=35 // pred_fallthru
        _
    $region36: #{attention_block.1} parent=5 // pred_fallthru
      _
    %p276 = scmp.le.s32.totalorder 1, %s15
    %p277 = scmp.lt.s32.totalorder %s15, 3
    %p278 = pnand %p276, %p277
    %p279 = pneg %p278
    // Predicated region
    $region45: #{attention_block.1} parent=5 // pred_check
      _
    $region46: #{attention_block.1} parent=5 // pred_check_branch
      %281 = sbr.rel (%p278) target = $region48
    $region47: #{attention_block.1} parent=5 // pred_region
      %s282 = ssub.s32 %s15, 1
      %s283 = smul.u32 2, %s25
      %p284 = scmp.lt.s32.totalorder %s24, 1
      %s285 = scalar_select %p284, %s24, 1
      %p286 = scmp.lt.s32.totalorder %s283, 1
      %s287 = scalar_select %p286, %s283, 1
      %s288 = smul.addr %s285, 2
      %s289 = sadd.s32 %s287, %s288
      %s290 = smul.addr %s289, 4
      %s291 = scalar_lea.vmem %s0, %s290
      %p292 = pneg %p55
      %p293 = pneg %p52
      %s294 = smul.u32 2, %s25
      %p295 = scmp.lt.s32.totalorder %s24, 1
      %s296 = scalar_select %p295, %s24, 1
      %p297 = scmp.lt.s32.totalorder %s294, 1
      %s298 = scalar_select %p297, %s294, 1
      %s299 = smul.addr %s296, 2
      %s300 = sadd.s32 %s298, %s299
      %s301 = smul.addr %s300, 4
      %s302 = scalar_lea.vmem %s1, %s301
      %p303 = pneg %p83
      %p304 = pneg %p80
      %p305 = pneg %p104
      %p306 = pneg %p101
      %p307 = pneg %p125
      %p308 = pneg %p122
      %p309 = pneg %p146
      %p310 = pneg %p143
      %p311 = pneg %p167
      %p312 = pneg %p164
      %p313 = pneg %p188
      %p314 = pneg %p185
      %p315 = pneg %p216
      %p316 = pneg %p213
      %s317 = smul.u32 2, %s25
      %p318 = scmp.lt.s32.totalorder %s24, 1
      %s319 = scalar_select %p318, %s24, 1
      %p320 = scmp.lt.s32.totalorder %s317, 1
      %s321 = scalar_select %p320, %s317, 1
      %s322 = smul.addr %s319, 2
      %s323 = sadd.s32 %s321, %s322
      %s324 = smul.addr %s323, 4
      %s325 = scalar_lea.vmem %s7, %s324
      %s326 = smul.u32 2, %s25
      %p327 = scmp.lt.s32.totalorder %s24, 1
      %s328 = scalar_select %p327, %s24, 1
      %p329 = scmp.lt.s32.totalorder %s326, 1
      %s330 = scalar_select %p329, %s326, 1
      %s331 = smul.addr %s328, 2
      %s332 = sadd.s32 %s330, %s331
      %s333 = smul.addr %s332, 4
      %s334 = scalar_lea.vmem %s0, %s333
      %s335 = smul.u32 2, %s25
      %s336 = smul.u32 2, %s25
      %p337 = scmp.lt.s32.totalorder %s24, 1
      %s338 = scalar_select %p337, %s24, 1
      %p339 = scmp.lt.s32.totalorder %s336, 1
      %s340 = scalar_select %p339, %s336, 1
      %s341 = smul.addr %s338, 2
      %s342 = sadd.s32 %s340, %s341
      %s343 = smul.addr %s342, 4
      %s344 = scalar_lea.vmem %s1, %s343
      %s345 = smul.u32 2, %s25
      %s346 = smul.u32 2, %s25
      %p347 = scmp.lt.s32.totalorder %s24, 1
      %s348 = scalar_select %p347, %s24, 1
      %p349 = scmp.lt.s32.totalorder %s346, 1
      %s350 = scalar_select %p349, %s346, 1
      %s351 = smul.addr %s348, 2
      %s352 = sadd.s32 %s350, %s351
      %s353 = smul.addr %s352, 4
      %s354 = scalar_lea.vmem %s7, %s353
      %s355 = smul.u32 2, %s25
      %v356 = vld [vmem:[%s2] sm:$0xff]
      %v357 = vld [vmem:[%s4] sm:$0xff]
      %v358 = vld [vmem:[%s5] sm:$0xff]
      %v359 = vld [vmem:[#allocation2] sm:$0x1]
      %v360 = vld [vmem:[%s3] sm:$0xff]
      %v361 = vld [vmem:[%s334] sm:$0xff]
      %v362 = vld [vmem:[%s344] sm:$0xff]
      %364 = vst [vmem:[#allocation1] ss:$2 sm:$0xff] %v362
      %v365 = vld.sshfl [vmem:[#allocation1] sm:$0xff pattern:$0x75316420]
      %v366 = vld.sshfl [vmem:[#allocation1 + $0x8] sm:$0xff pattern:$0x75316420]
      %vm367 = vcmask 31744
      %v369 = vsel %vm367, %v360, 0
      %vm371 = vcmask 1043456
      %v372 = vsel %vm371, %v365, 0
      %v374 = vsel %vm371, %v366, 0
      %376 = vmatpush.msra.mxu0 0.0
      %377 = vmatpush.msra.mxu0 0.0
      %378 = vmatpush.msra.mxu0 0.0
      %379 = vmatpush.msra.mxu0 0.0
      %380 = vmatpush.msra.mxu0 0.0
      %381 = vmatpush.msra.mxu0 0.0
      %382 = vmatpush.msra.mxu0 0.0
      %383 = vmatpush.msra.mxu0 0.0
      %384 = vmatpush.msra.mxu0 0.0
      %385 = vmatpush.msra.mxu0 0.0
      %386 = vmatpush.msra.mxu0 0.0
      %387 = vmatpush.msra.mxu0 0.0
      %388 = vmatpush.msra.mxu0 0.0
      %389 = vmatpush.msra.mxu0 0.0
      %390 = vmatpush.msra.mxu0 0.0
      %391 = vmatpush.msra.mxu0 %v372
      %392 = vmatmul.f32.gmra.mxu0 %v369
      %v393 = vpop.f32.mrf.mxu0
      %v394 = vadd.f32 0.0, %v393
      %395 = vdwg.mxu0
      %396 = vmatpush.msra.mxu0 0.0
      %397 = vmatpush.msra.mxu0 0.0
      %398 = vmatpush.msra.mxu0 0.0
      %399 = vmatpush.msra.mxu0 0.0
      %400 = vmatpush.msra.mxu0 0.0
      %401 = vmatpush.msra.mxu0 0.0
      %402 = vmatpush.msra.mxu0 0.0
      %403 = vmatpush.msra.mxu0 0.0
      %404 = vmatpush.msra.mxu0 0.0
      %405 = vmatpush.msra.mxu0 0.0
      %406 = vmatpush.msra.mxu0 0.0
      %407 = vmatpush.msra.mxu0 0.0
      %408 = vmatpush.msra.mxu0 0.0
      %409 = vmatpush.msra.mxu0 0.0
      %410 = vmatpush.msra.mxu0 0.0
      %411 = vmatpush.msra.mxu0 %v374
      %412 = vmatmul.f32.gmra.mxu0 %v369
      %v413 = vpop.f32.mrf.mxu0
      %v414 = vadd.f32 0.0, %v413
      %415 = vdwg.mxu0
      %417 = vst [vmem:[#allocation1] ss:$2 sm:$0xff] %v361
      %v418 = vld.sshfl [vmem:[#allocation1] sm:$0xff pattern:$0x75316420]
      %v419 = vld.sshfl [vmem:[#allocation1 + $0x8] sm:$0xff pattern:$0x75316420]
      %v421 = vsel %vm367, %v356, 0
      %v423 = vsel %vm371, %v418, 0
      %v425 = vsel %vm371, %v419, 0
      %427 = vmatpush.msra.mxu0 0.0
      %428 = vmatpush.msra.mxu0 0.0
      %429 = vmatpush.msra.mxu0 0.0
      %430 = vmatpush.msra.mxu0 0.0
      %431 = vmatpush.msra.mxu0 0.0
      %432 = vmatpush.msra.mxu0 0.0
      %433 = vmatpush.msra.mxu0 0.0
      %434 = vmatpush.msra.mxu0 0.0
      %435 = vmatpush.msra.mxu0 0.0
      %436 = vmatpush.msra.mxu0 0.0
      %437 = vmatpush.msra.mxu0 0.0
      %438 = vmatpush.msra.mxu0 0.0
      %439 = vmatpush.msra.mxu0 0.0
      %440 = vmatpush.msra.mxu0 0.0
      %441 = vmatpush.msra.mxu0 0.0
      %442 = vmatpush.msra.mxu0 %v423
      %443 = vmatmul.f32.gmra.mxu0 %v421
      %v444 = vpop.f32.mrf.mxu0
      %v445 = vadd.f32 %v394, %v444
      %446 = vdwg.mxu0
      %447 = vmatpush.msra.mxu0 0.0
      %448 = vmatpush.msra.mxu0 0.0
      %449 = vmatpush.msra.mxu0 0.0
      %450 = vmatpush.msra.mxu0 0.0
      %451 = vmatpush.msra.mxu0 0.0
      %452 = vmatpush.msra.mxu0 0.0
      %453 = vmatpush.msra.mxu0 0.0
      %454 = vmatpush.msra.mxu0 0.0
      %455 = vmatpush.msra.mxu0 0.0
      %456 = vmatpush.msra.mxu0 0.0
      %457 = vmatpush.msra.mxu0 0.0
      %458 = vmatpush.msra.mxu0 0.0
      %459 = vmatpush.msra.mxu0 0.0
      %460 = vmatpush.msra.mxu0 0.0
      %461 = vmatpush.msra.mxu0 0.0
      %462 = vmatpush.msra.mxu0 %v425
      %463 = vmatmul.f32.gmra.mxu0 %v421
      %v464 = vpop.f32.mrf.mxu0
      %v465 = vadd.f32 %v414, %v464
      %466 = vdwg.mxu0
      %468 = vset.pattern.permute.xlu0 0
      %469 = vperm.xlu0 %468, %v357
      %v470 = vpop.permute.xlu0 %469
      %v472 = vadd.f32 %v445, %v470
      %v473 = vadd.f32 %v465, %v470
      %v474 = vmax.f32 %v472, 0.0
      %v475 = vmax.f32 %v473, 0.0
      %477 = vset.pattern.permute.xlu0 0
      %478 = vperm.xlu0 %477, %v358
      %v479 = vpop.permute.xlu0 %478
      %v481 = vmul.f32 %v474, %v479
      %v482 = vmul.f32 %v475, %v479
      %v483 = vrot.slane %v481, 4
      %v484 = vadd.f32 %v481, %v483
      %v485 = vrot.slane %v484, 2
      %v486 = vadd.f32 %v484, %v485
      %v487 = vrot.slane %v486, 1
      %v488 = vadd.f32 %v486, %v487
      %v489 = vrot.slane %v482, 4
      %v490 = vadd.f32 %v482, %v489
      %v491 = vrot.slane %v490, 2
      %v492 = vadd.f32 %v490, %v491
      %v493 = vrot.slane %v492, 1
      %v494 = vadd.f32 %v492, %v493
      %496 = vset.pattern.permute.xlu0 0
      %497 = vperm.xlu0 %496, %v359
      %v498 = vpop.permute.xlu0 %497
      %v500 = vperm.slane %v498, 0
      %v501 = vadd.f32 %v488, %v500
      %v502 = vadd.f32 %v494, %v500
      %v503 = vxor.u32 %v501, 2147483648
      %v504 = vxor.u32 %v502, 2147483648
      %v505 = vmul.f32 %v503, 1.442695
      %v506 = vpow.pop %v505
      %v507 = vmul.f32 %v504, 1.442695
      %v508 = vpow.pop %v507
      %v509 = vadd.f32 %v506, 1.0
      %v510 = vadd.f32 %v508, 1.0
      %v511 = vrcp.pop %v509
      %v512 = vmul.f32 %v509, %v511
      %v513 = vsub.f32 1.0, %v512
      %v514 = vmul.f32 %v511, %v513
      %v515 = vadd.f32 %v511, %v514
      %vm516 = vweird.f32 %v509
      %vm517 = vweird.f32 %v511
      %vm518 = vmor %vm516, %vm517
      %v519 = vsel %vm518, %v511, %v515
      %v520 = vand.u32 2147483647, %v509
      %vm521 = vcmp.eq.f32.partialorder %v520, 8.507059e+37
      %v522 = vand.u32 %v509, 2147483648
      %v523 = vor.u32 1.1754944e-38, %v522
      %v524 = vsel %vm521, %v523, %v519
      %v525 = vmul.f32 1.0, %v524
      %v526 = vrcp.pop %v510
      %v527 = vmul.f32 %v510, %v526
      %v528 = vsub.f32 1.0, %v527
      %v529 = vmul.f32 %v526, %v528
      %v530 = vadd.f32 %v526, %v529
      %vm531 = vweird.f32 %v510
      %vm532 = vweird.f32 %v526
      %vm533 = vmor %vm531, %vm532
      %v534 = vsel %vm533, %v526, %v530
      %v535 = vand.u32 2147483647, %v510
      %vm536 = vcmp.eq.f32.partialorder %v535, 8.507059e+37
      %v537 = vand.u32 %v510, 2147483648
      %v538 = vor.u32 1.1754944e-38, %v537
      %v539 = vsel %vm536, %v538, %v534
      %v540 = vmul.f32 1.0, %v539
      %v543 = vrot.slane %v540, 4
      %v544 = vsel %vm371, %v525, %v543
      %v546 = vmul.f32 %v361, %v544
      %547 = vst [vmem:[%s354] sm:$0xff] %v546
      %s548 = smul.u32 2, %s25
      %p549 = scmp.lt.s32.totalorder %s24, 1
      %s550 = scalar_select %p549, %s24, 1
      %p551 = scmp.lt.s32.totalorder %s548, 1
      %s552 = scalar_select %p551, %s548, 1
      %s553 = smul.addr %s550, 2
      %s554 = sadd.s32 %s552, %s553
      %s555 = smul.addr %s554, 4
      %s556 = scalar_lea.vmem %s7, %s555
      // Predicated region
      $region49: #{attention_block.1} parent=47 // pred_check
        %p557 = pneg %p213
      $region50: #{attention_block.1} parent=47 // pred_check_branch
        %559 = sbr.rel (%p557) target = $region52
      $region51: #{attention_block.1} parent=47 // pred_region
        %s560 = smul.u32 2, %s25
      $region52: #{attention_block.1} parent=47 // pred_fallthru
        _
    $region48: #{attention_block.1} parent=5 // pred_fallthru
      _
    %p561 = scmp.le.s32.totalorder 2, %s15
    // Predicated region
    $region53: #{attention_block.1} parent=5 // pred_check
      %p562 = pneg %p561
    $region54: #{attention_block.1} parent=5 // pred_check_branch
      %564 = sbr.rel (%p562) target = $region56
    $region55: #{attention_block.1} parent=5 // pred_region
      %s565 = ssub.s32 %s15, 2
      // Predicated region
      $region57: #{attention_block.1} parent=55 // pred_check
        %p566 = pneg %p219
      $region58: #{attention_block.1} parent=55 // pred_check_branch
        %568 = sbr.rel (%p566) target = $region60
      $region59: #{attention_block.1} parent=55 // pred_region
        %s569 = smul.u32 2, %s27
        %p570 = scmp.lt.s32.totalorder %s26, 1
        %s571 = scalar_select %p570, %s26, 1
        %p572 = scmp.lt.s32.totalorder %s569, 1
        %s573 = scalar_select %p572, %s569, 1
        %s574 = smul.addr %s571, 2
        %s575 = sadd.s32 %s573, %s574
        %s576 = smul.addr %s575, 4
        %s577 = scalar_lea.vmem %s7, %s576
      $region60: #{attention_block.1} parent=55 // pred_fallthru
        _
    $region56: #{attention_block.1} parent=5 // pred_fallthru
      _
  $region6: #{attention_block.1} parent=0 // loop_footer
    %s19 = sadd.s32 1, %s15
  $region7: #{attention_block.1} parent=0 // loop_footer_branch
    %14 = sbr.rel target = $region3
  $region8: #{attention_block.1} parent=0 // loop_exit
    _

</llo_original>
